<compile_context>
chip_gen: v7x
topology: tpu7x:2x2x1
jax: 0.10.0
libtpu: 0.0.40
codegen_flags: <defaults>
</compile_context>

<pallas_src>
from functools import partial

import jax
import jax.numpy as jnp
from jax.experimental import pallas as pl
from jax.experimental.pallas import tpu as pltpu


def _round_up(x, m):
    return ((x + m - 1) // m) * m


# ------------------------------ Pallas kernel -------------------------------

def _stacking_proj_kernel(x_ref, w_ref, b_ref, o_ref, xs_ref, *,
                          factor, feat_in, t_valid, time_tile):
    """One (batch, time-tile) block of the stacked-frame projection.

    x_ref : (time_tile*factor, feat_in)  unpadded source frames (rows past
            t_valid are PyTorch pad rows / stale VMEM -> masked to zero).
    w_ref : (factor*feat_in, feat_out)   VMEM-resident, pre-transposed weight.
    b_ref : (1, feat_out)                VMEM-resident bias.
    o_ref : (time_tile, feat_out)
    xs_ref: (time_tile*factor, feat_in)  f32 staging scratch.
    """
    block_rows = time_tile * factor
    n_out = o_ref.shape[-1]
    # First source-frame index of this block (logical position, pre-clamp).
    t0 = pl.program_id(1) * block_rows

    # Zero the PyTorch pad rows and the ragged/stale tail ONCE, staging the
    # block as f32 so the strided stacking reads below operate on 32-bit data.
    src_t = t0 + jax.lax.broadcasted_iota(jnp.int32, (block_rows, feat_in), 0)
    xs_ref[...] = jnp.where(src_t < t_valid, x_ref[...], 0).astype(xs_ref.dtype)

    # Stacked-frame Linear: out[j] = sum_f x[j*factor + f] @ W[f*H:(f+1)*H] + b
    # `factor` is a small static int -> unrolled; each term is a sublane-strided
    # read (stride = factor) feeding an MXU dot with f32 accumulation.
    acc = jnp.zeros((time_tile, n_out), jnp.float32)
    for f in range(factor):
        rows = xs_ref[pl.ds(f, time_tile, stride=factor), :]      # (tt, feat_in)
        acc = acc + jnp.dot(rows, w_ref[f * feat_in:(f + 1) * feat_in, :],
                            preferred_element_type=jnp.float32)

    o_ref[...] = (acc + b_ref[...].astype(jnp.float32)).astype(o_ref.dtype)


# -------------------------------- wrapper ------------------------------------

def stacking_subsampling(x, lengths, w_t, bias, *, subsampling_factor,
                         out_dtype=None, max_time_tile=1024):
    """StackingSubsampling forward.  Returns (out, new_lengths).

    x    : (B, T, feat_in)
    w_t  : (subsampling_factor*feat_in, feat_out)  == nn.Linear weight, transposed
    bias : (1, feat_out)
    """
    B, T, H = x.shape
    K, N = w_t.shape
    factor = subsampling_factor
    assert K == factor * H, (K, factor, H)
    out_dtype = x.dtype if out_dtype is None else jnp.dtype(out_dtype)

    # Matches PyTorch: a FULL extra block is padded even when T % factor == 0,
    # so T_out == T // factor + 1 in that case (not ceil(T / factor)).
    pad_size = factor - T % factor
    t_out = (T + pad_size) // factor

    # ---- time-tile selection: output rows per block, multiple of 8, capped so
    # double-buffered blocks + staging scratch sit well under the 32 MiB scoped
    # VMEM default (also safe on v7x's 64 MiB physical VMEM).
    tt = min(_round_up(t_out, 8), max(_round_up(max_time_tile, 8), 8))

    def _vmem_bytes(tt_):
        lanes_in = _round_up(H, 128)
        lanes_out = _round_up(N, 128)
        x_blk = tt_ * factor * lanes_in * x.dtype.itemsize
        o_blk = tt_ * lanes_out * out_dtype.itemsize
        stage = tt_ * factor * lanes_in * 4
        return 2 * (x_blk + o_blk) + stage          # 2x: double-buffered blocks

    while tt > 8 and _vmem_bytes(tt) > (24 << 20):
        tt = _round_up(tt // 2, 8)

    grid_t = pl.cdiv(t_out, tt)
    # v7x has 2 TensorCores: prefer >= 2 "parallel" grid steps when possible.
    if B * grid_t < 2 and t_out > 8:
        tt = _round_up(pl.cdiv(t_out, 2), 8)
        grid_t = pl.cdiv(t_out, tt)

    block_rows = tt * factor
    # When T % factor == 0, the last time block can start exactly at T (it only
    # covers PyTorch pad rows).  Clamp its DMA window into bounds; all of its
    # rows are masked in-kernel anyway, so the fetched contents are irrelevant.
    last_x_blk = max((T - 1) // block_rows, 0)

    kernel = partial(_stacking_proj_kernel, factor=factor, feat_in=H,
                     t_valid=T, time_tile=tt)

    cost = pl.CostEstimate(
        flops=2 * B * t_out * K * N,
        transcendentals=0,
        bytes_accessed=(x.size * x.dtype.itemsize
                        + w_t.size * w_t.dtype.itemsize
                        + bias.size * bias.dtype.itemsize
                        + B * t_out * N * out_dtype.itemsize),
    )

    out = pl.pallas_call(
        kernel,
        out_shape=jax.ShapeDtypeStruct((B, t_out, N), out_dtype),
        grid=(B, grid_t),
        in_specs=[
            # Unpadded source frames; padding + stacking handled in-kernel.
            pl.BlockSpec((None, block_rows, H),
                         lambda b, j: (b, jnp.minimum(j, last_x_blk), 0)),
            pl.BlockSpec((K, N), lambda b, j: (0, 0)),   # weight, VMEM-resident
            pl.BlockSpec((1, N), lambda b, j: (0, 0)),   # bias, VMEM-resident
        ],
        out_specs=pl.BlockSpec((None, tt, N), lambda b, j: (b, j, 0)),
        scratch_shapes=[pltpu.VMEM((block_rows, H), jnp.float32)],
        compiler_params=pltpu.CompilerParams(
            dimension_semantics=("parallel", "parallel"),
        ),
        cost_estimate=cost,
    )(x, w_t, bias)

    # Trivial scalar math on a (B,) vector -- stays in the JAX wrapper.
    new_lengths = (lengths + pad_size) // factor
    return out, new_lengths


# ---------------------------------- main -------------------------------------

def _reference(x, lengths, w, b, factor):
    """Pure-JAX reference with exact PyTorch semantics (f32 math)."""
    B, T, H = x.shape
    pad = factor - T % factor
    xp = jnp.pad(x.astype(jnp.float32), ((0, 0), (0, pad), (0, 0)))
    xr = xp.reshape(B, (T + pad) // factor, factor * H)
    out = jnp.einsum("btk,nk->btn", xr, w.astype(jnp.float32),
                     precision=jax.lax.Precision.HIGHEST) + b.astype(jnp.float32)
    return out, (lengths + pad) // factor


def _run_case(name, key, *, B, T, feat_in, feat_out, factor, dtype,
              max_time_tile, tol):
    kx, kw, kb = jax.random.split(key, 3)
    x = jax.random.normal(kx, (B, T, feat_in), jnp.float32).astype(dtype)
    w = (0.1 * jax.random.normal(kw, (feat_out, factor * feat_in),
                                 jnp.float32)).astype(dtype)   # PyTorch (N, K)
    b = (0.1 * jax.random.normal(kb, (feat_out,), jnp.float32)).astype(dtype)
    lengths = jnp.array([T, T - 3], dtype=jnp.int32)[:B]

    w_t = jnp.transpose(w)            # (K, N), pre-transposed once
    bias = b.reshape(1, feat_out)     # (1, N)

    fwd = jax.jit(partial(stacking_subsampling, subsampling_factor=factor,
                          max_time_tile=max_time_tile))
    out, new_len = fwd(x, lengths, w_t, bias)
    out = jax.block_until_ready(out)
    new_len = jax.block_until_ready(new_len)

    ref, ref_len = _reference(x, lengths, w, b, factor)
    pad = factor - T % factor
    t_out = (T + pad) // factor
    out_f32 = out.astype(jnp.float32)

    assert out.shape == (B, t_out, feat_out), (name, out.shape)
    assert new_len.shape == (B,), (name, new_len.shape)
    assert bool(jnp.all(jnp.isfinite(out_f32))), name
    max_err = float(jnp.max(jnp.abs(out_f32 - ref)))
    assert bool(jnp.allclose(out_f32, ref, atol=tol, rtol=tol)), (name, max_err)
    assert bool(jnp.array_equal(new_len, ref_len)), (name, new_len, ref_len)


if __name__ == "__main__":
    k1, k2 = jax.random.split(jax.random.PRNGKey(0))

    # Case 1: f32, lane-aligned K (=128) and feat_out (=128) -> lane-dense
    # stores, default adaptive time tiling (single block per batch here).
    _run_case("f32_aligned", k1, B=2, T=50, feat_in=32, feat_out=128, factor=4,
              dtype=jnp.float32, max_time_tile=1024, tol=2e-2)

    # Case 2: bf16 streamed I/O, tiny unaligned dims, forced 8-row time tiles
    # so the multi-block path (ragged tail, all-padding last block with clamped
    # DMA window, masked narrow stores) is exercised.
    _run_case("bf16_small", k2, B=2, T=32, feat_in=16, feat_out=32, factor=4,
              dtype=jnp.bfloat16, max_time_tile=8, tol=5e-2)

    print("KERNEL_OK")
</pallas_src>

<mosaic_0001>
module attributes {stable_mosaic.version = 11 : i64} {
  func.func @_stacking_proj_kernel(%arg0: i32, %arg1: i32, %arg2: memref<1x64x32xf32, #tpu.memory_space<vmem>>, %arg3: memref<128x128xf32, #tpu.memory_space<vmem>>, %arg4: memref<1x128xf32, #tpu.memory_space<vmem>>, %arg5: memref<1x16x128xf32, #tpu.memory_space<vmem>>, %arg6: memref<64x32xf32, #tpu.memory_space<vmem>>) attributes {dimension_semantics = [#tpu.dimension_semantics<parallel>, #tpu.dimension_semantics<parallel>], iteration_bounds = array<i64: 2, 1>, scalar_prefetch = 0 : i64, scratch_operands = 1 : i64, tpu.core_type = #tpu.core_type<tc>, window_params = [{transform_indices = @transform_0, window_bounds = array<i64: 1, 64, 32>}, {pipeline_mode = #tpu.pipeline_mode<synchronous>, transform_indices = @transform_1, window_bounds = array<i64: 128, 128>}, {pipeline_mode = #tpu.pipeline_mode<synchronous>, transform_indices = @transform_2, window_bounds = array<i64: 1, 128>}, {transform_indices = @transform_3, window_bounds = array<i64: 1, 16, 128>}]} {
    %c64_i32 = arith.constant 64 : i32
    %0 = arith.muli %arg1, %c64_i32 : i32
    %1 = tpu.iota {dimensions = array<i32: 0>} : vector<64x32xi32>
    %2 = vector.broadcast %0 : i32 to vector<64x32xi32>
    %3 = arith.addi %2, %1 : vector<64x32xi32>
    %c50_i32 = arith.constant 50 : i32
    %4 = vector.broadcast %c50_i32 : i32 to vector<64x32xi32>
    %5 = arith.cmpi slt, %3, %4 : vector<64x32xi32>
    %c0 = arith.constant 0 : index
    %c0_0 = arith.constant 0 : index
    %c0_1 = arith.constant 0 : index
    %6 = vector.load %arg2[%c0, %c0_0, %c0_1] : memref<1x64x32xf32, #tpu.memory_space<vmem>>, vector<1x64x32xf32>
    %7 = vector.shape_cast %6 : vector<1x64x32xf32> to vector<64x32xf32>
    %c0_i32 = arith.constant 0 : i32
    %8 = arith.sitofp %c0_i32 : i32 to f32
    %9 = vector.broadcast %8 : f32 to vector<64x32xf32>
    %10 = arith.select %5, %7, %9 : vector<64x32xi1>, vector<64x32xf32>
    %c0_2 = arith.constant 0 : index
    %c0_3 = arith.constant 0 : index
    %11 = vector.load %arg6[%c0_2, %c0_3] : memref<64x32xf32, #tpu.memory_space<vmem>>, vector<64x32xf32>
    tpu.vector_store %arg6[%c0_2, %c0_3], %10 {strides = array<i32>} : memref<64x32xf32, #tpu.memory_space<vmem>>, vector<64x32xf32>,
    %cst = arith.constant 0.000000e+00 : f32
    %12 = vector.broadcast %cst : f32 to vector<16x128xf32>
    %c0_4 = arith.constant 0 : index
    %c0_5 = arith.constant 0 : index
    %13 = tpu.strided_load %arg6[%c0_4, %c0_5] {strides = array<i32: 4, 1>} : memref<64x32xf32, #tpu.memory_space<vmem>>, vector<16x32xf32>
    %c0_6 = arith.constant 0 : index
    %c0_7 = arith.constant 0 : index
    %14 = vector.load %arg3[%c0_6, %c0_7] : memref<128x128xf32, #tpu.memory_space<vmem>>, vector<32x128xf32>
    %cst_8 = arith.constant dense<0.000000e+00> : vector<16x128xf32>
    %15 = tpu.matmul %13, %14, %cst_8 {dimension_numbers = #tpu.dot_dimension_numbers<[1], [0], [0], [1], [0, 0, 1, 1], [], []>} : vector<16x32xf32>, vector<32x128xf32>, vector<16x128xf32> -> vector<16x128xf32>
    %16 = arith.addf %12, %15 : vector<16x128xf32>
    %c1 = arith.constant 1 : index
    %c0_9 = arith.constant 0 : index
    %17 = tpu.strided_load %arg6[%c1, %c0_9] {strides = array<i32: 4, 1>} : memref<64x32xf32, #tpu.memory_space<vmem>>, vector<16x32xf32>
    %c32 = arith.constant 32 : index
    %c0_10 = arith.constant 0 : index
    %18 = vector.load %arg3[%c32, %c0_10] : memref<128x128xf32, #tpu.memory_space<vmem>>, vector<32x128xf32>
    %cst_11 = arith.constant dense<0.000000e+00> : vector<16x128xf32>
    %19 = tpu.matmul %17, %18, %cst_11 {dimension_numbers = #tpu.dot_dimension_numbers<[1], [0], [0], [1], [0, 0, 1, 1], [], []>} : vector<16x32xf32>, vector<32x128xf32>, vector<16x128xf32> -> vector<16x128xf32>
    %20 = arith.addf %16, %19 : vector<16x128xf32>
    %c2 = arith.constant 2 : index
    %c0_12 = arith.constant 0 : index
    %21 = tpu.strided_load %arg6[%c2, %c0_12] {strides = array<i32: 4, 1>} : memref<64x32xf32, #tpu.memory_space<vmem>>, vector<16x32xf32>
    %c64 = arith.constant 64 : index
    %c0_13 = arith.constant 0 : index
    %22 = vector.load %arg3[%c64, %c0_13] : memref<128x128xf32, #tpu.memory_space<vmem>>, vector<32x128xf32>
    %cst_14 = arith.constant dense<0.000000e+00> : vector<16x128xf32>
    %23 = tpu.matmul %21, %22, %cst_14 {dimension_numbers = #tpu.dot_dimension_numbers<[1], [0], [0], [1], [0, 0, 1, 1], [], []>} : vector<16x32xf32>, vector<32x128xf32>, vector<16x128xf32> -> vector<16x128xf32>
    %24 = arith.addf %20, %23 : vector<16x128xf32>
    %c3 = arith.constant 3 : index
    %c0_15 = arith.constant 0 : index
    %25 = tpu.strided_load %arg6[%c3, %c0_15] {strides = array<i32: 4, 1>} : memref<64x32xf32, #tpu.memory_space<vmem>>, vector<16x32xf32>
    %c96 = arith.constant 96 : index
    %c0_16 = arith.constant 0 : index
    %26 = vector.load %arg3[%c96, %c0_16] : memref<128x128xf32, #tpu.memory_space<vmem>>, vector<32x128xf32>
    %cst_17 = arith.constant dense<0.000000e+00> : vector<16x128xf32>
    %27 = tpu.matmul %25, %26, %cst_17 {dimension_numbers = #tpu.dot_dimension_numbers<[1], [0], [0], [1], [0, 0, 1, 1], [], []>} : vector<16x32xf32>, vector<32x128xf32>, vector<16x128xf32> -> vector<16x128xf32>
    %28 = arith.addf %24, %27 : vector<16x128xf32>
    %c0_18 = arith.constant 0 : index
    %c0_19 = arith.constant 0 : index
    %29 = vector.load %arg4[%c0_18, %c0_19] : memref<1x128xf32, #tpu.memory_space<vmem>>, vector<1x128xf32>
    %30 = vector.broadcast %29 : vector<1x128xf32> to vector<16x128xf32>
    %31 = arith.addf %28, %30 : vector<16x128xf32>
    %c0_20 = arith.constant 0 : index
    %c0_21 = arith.constant 0 : index
    %c0_22 = arith.constant 0 : index
    %32 = vector.load %arg5[%c0_20, %c0_21, %c0_22] : memref<1x16x128xf32, #tpu.memory_space<vmem>>, vector<1x16x128xf32>
    %33 = vector.shape_cast %32 : vector<1x16x128xf32> to vector<16x128xf32>
    %34 = vector.shape_cast %31 : vector<16x128xf32> to vector<1x16x128xf32>
    tpu.vector_store %arg5[%c0_20, %c0_21, %c0_22], %34 {strides = array<i32>} : memref<1x16x128xf32, #tpu.memory_space<vmem>>, vector<1x16x128xf32>,
    return
  }
  func.func @transform_0(%arg0: i32, %arg1: i32) -> (i32, i32, i32) {
    %c0_i32 = arith.constant 0 : i32
    %0 = arith.minsi %arg1, %c0_i32 : i32
    %c0_i32_0 = arith.constant 0 : i32
    %c0_i32_1 = arith.constant 0 : i32
    return %arg0, %0, %c0_i32_0 : i32, i32, i32
  }
  func.func @transform_1(%arg0: i32, %arg1: i32) -> (i32, i32) {
    %c0_i32 = arith.constant 0 : i32
    %c0_i32_0 = arith.constant 0 : i32
    %c0_i32_1 = arith.constant 0 : i32
    return %c0_i32, %c0_i32_0 : i32, i32
  }
  func.func @transform_2(%arg0: i32, %arg1: i32) -> (i32, i32) {
    %c0_i32 = arith.constant 0 : i32
    %c0_i32_0 = arith.constant 0 : i32
    %c0_i32_1 = arith.constant 0 : i32
    return %c0_i32, %c0_i32_0 : i32, i32
  }
  func.func @transform_3(%arg0: i32, %arg1: i32) -> (i32, i32, i32) {
    %c0_i32 = arith.constant 0 : i32
    %c0_i32_0 = arith.constant 0 : i32
    return %arg0, %arg1, %c0_i32 : i32, i32, i32
  }
}

</mosaic_0001>

<llo_original>
// kernel: stacking_subsampling.1
$region0: #{stacking_subsampling.1}
  #allocation0 [shape = 'u32[]', space=smem, size = 0x4, offset = 0x4, fixed_abs, tag = 'smem constant byte address 0x4 - core index']
  #allocation1 [shape = 'u32[144,128]{1,0:T(1,128)}', space=vmem, size = 0x12000, scoped, tag = 'internal scratch']
  #allocation2 [shape = 'f32[64,32]{1,0:T(8,128)}', space=vmem, size = 0x8000, scoped, tag = 'scratch operand']
  %s0 = inlined_call_operand.vmem [shape: f32[2,50,32], index: 0, kind: input, shape index: {}]
  %s1 = inlined_call_operand.vmem [shape: f32[128,128], index: 1, kind: input, shape index: {}]
  %s2 = inlined_call_operand.vmem [shape: f32[1,128], index: 2, kind: input, shape index: {}]
  %s3 = inlined_call_operand.vmem [shape: f32[2,13,128], index: 3, kind: output, shape index: {}]
  %s4 = sld [smem:[#allocation0]]
  $region45: #{stacking_subsampling.1} parent=0
    _
  %s6 = ssub.s32 1, %s4
  %s7 = scalar_select 0, %s6, %s4
  loop: start=0, step=1, limit=4
  $region2: #{stacking_subsampling.1} parent=0 // loop_pre_header
    _
  $region3: #{stacking_subsampling.1} parent=0 // loop_header
    %s9 = sphi 0, %s13
    %p10 = scmp.ge.s32.totalorder %s9, 4
    %s16 = sphi 0, %s28
    %s17 = sphi 0, %s24
    %s18 = sphi 0, %s16
    %s19 = sphi 0, %s17
    %s20 = sphi 0, %s18
    %s21 = sphi 0, %s19
    %s37 = sphi 0, %s39
    %s40 = sphi 0, %s37
    %s41 = sphi 0, %s40
    %s57 = sphi 0, %s41
    %s61 = sphi 0, %s61
    %s63 = sphi 0, %s61
    %s64 = sphi 0, %s63
    %s78 = sphi 0, %s64
    %s82 = sphi 0, %s82
    %s84 = sphi 0, %s82
    %s85 = sphi 0, %s84
    %s99 = sphi 0, %s85
    %s107 = sphi 0, %s109
    %s110 = sphi 0, %s107
    %s111 = sphi 0, %s110
    %s127 = sphi 0, %s111
  $region4: #{stacking_subsampling.1} parent=0 // loop_header_branch
    %12 = sbr.rel (%p10) target = $region8
  $region5: #{stacking_subsampling.1} parent=0 // loop_body
    %s14 = ssub.s32 %s9, 1
    %s15 = ssub.s32 %s9, 2
    %s22 = sadd.s32 1, %s17
    %p23 = scmp.ge.s32.totalorder %s22, 1
    %s24 = scalar_select %p23, 0, %s22
    %s25 = sadd.s32 1, %s16
    %s26 = scalar_select %p23, %s25, %s16
    %p27 = scmp.ge.s32.totalorder %s26, 2
    %s28 = scalar_select %p27, 0, %s26
    %p29 = scmp.lt.s32.totalorder %s17, 0
    %s30 = scalar_select %p29, %s17, 0
    %p31 = scmp.lt.s32.totalorder %s24, 0
    %s32 = scalar_select %p31, %s24, 0
    %s33 = ssub.s32 %s16, %s28
    %s34 = ssub.s32 %s30, %s32
    %s35 = sor.u32 %s33, %s34
    %p36 = scmp.eq.s32.totalorder %s35, 0
    %s38 = sadd.s32 %s37, 1
    %s39 = scalar_select %p36, %s37, %s38
    %p42 = pneg %p36
    %p43 = scmp.eq.s32.totalorder %s9, 1
    %p44 = por %p42, %p43
    %p45 = scmp.ne.s32.totalorder %s37, %s40
    %p46 = scmp.eq.s32.totalorder %s9, 0
    %p47 = por %p45, %p46
    %p48 = scmp.ne.s32.totalorder %s37, %s40
    %p49 = scmp.eq.s32.totalorder %s14, 1
    %p50 = por %p48, %p49
    %p51 = scmp.ne.s32.totalorder %s40, %s41
    %p52 = scmp.eq.s32.totalorder %s14, 0
    %p53 = por %p51, %p52
    %p54 = scmp.ne.s32.totalorder %s40, %s41
    %p55 = scmp.eq.s32.totalorder %s15, 1
    %p56 = por %p54, %p55
    %p58 = scmp.ne.s32.totalorder %s41, %s57
    %p59 = scmp.eq.s32.totalorder %s15, 0
    %p60 = por %p58, %p59
    %s62 = sadd.s32 %s61, 1
    %p65 = scmp.eq.s32.totalorder %s9, 1
    %p66 = scmp.ne.s32.totalorder %s61, %s63
    %p67 = scmp.eq.s32.totalorder %s9, 0
    %p68 = por %p66, %p67
    %p69 = scmp.ne.s32.totalorder %s61, %s63
    %p70 = scmp.eq.s32.totalorder %s14, 1
    %p71 = por %p69, %p70
    %p72 = scmp.ne.s32.totalorder %s63, %s64
    %p73 = scmp.eq.s32.totalorder %s14, 0
    %p74 = por %p72, %p73
    %p75 = scmp.ne.s32.totalorder %s63, %s64
    %p76 = scmp.eq.s32.totalorder %s15, 1
    %p77 = por %p75, %p76
    %p79 = scmp.ne.s32.totalorder %s64, %s78
    %p80 = scmp.eq.s32.totalorder %s15, 0
    %p81 = por %p79, %p80
    %s83 = sadd.s32 %s82, 1
    %p86 = scmp.eq.s32.totalorder %s9, 1
    %p87 = scmp.ne.s32.totalorder %s82, %s84
    %p88 = scmp.eq.s32.totalorder %s9, 0
    %p89 = por %p87, %p88
    %p90 = scmp.ne.s32.totalorder %s82, %s84
    %p91 = scmp.eq.s32.totalorder %s14, 1
    %p92 = por %p90, %p91
    %p93 = scmp.ne.s32.totalorder %s84, %s85
    %p94 = scmp.eq.s32.totalorder %s14, 0
    %p95 = por %p93, %p94
    %p96 = scmp.ne.s32.totalorder %s84, %s85
    %p97 = scmp.eq.s32.totalorder %s15, 1
    %p98 = por %p96, %p97
    %p100 = scmp.ne.s32.totalorder %s85, %s99
    %p101 = scmp.eq.s32.totalorder %s15, 0
    %p102 = por %p100, %p101
    %s103 = ssub.s32 %s16, %s28
    %s104 = ssub.s32 %s17, %s24
    %s105 = sor.u32 %s103, %s104
    %p106 = scmp.eq.s32.totalorder %s105, 0
    %s108 = sadd.s32 %s107, 1
    %s109 = scalar_select %p106, %s107, %s108
    %p112 = pneg %p106
    %p113 = scmp.eq.s32.totalorder %s9, 1
    %p114 = por %p112, %p113
    %p115 = scmp.ne.s32.totalorder %s107, %s110
    %p116 = scmp.eq.s32.totalorder %s9, 0
    %p117 = por %p115, %p116
    %p118 = scmp.ne.s32.totalorder %s107, %s110
    %p119 = scmp.eq.s32.totalorder %s14, 1
    %p120 = por %p118, %p119
    %p121 = scmp.ne.s32.totalorder %s110, %s111
    %p122 = scmp.eq.s32.totalorder %s14, 0
    %p123 = por %p121, %p122
    %p124 = scmp.ne.s32.totalorder %s110, %s111
    %p125 = scmp.eq.s32.totalorder %s15, 1
    %p126 = por %p124, %p125
    %p128 = scmp.ne.s32.totalorder %s111, %s127
    %p129 = scmp.eq.s32.totalorder %s15, 0
    %p130 = por %p128, %p129
    %p131 = scmp.le.s32.totalorder 1, %s9
    %p132 = scmp.lt.s32.totalorder %s9, 3
    %p133 = pnand %p131, %p132
    %p134 = pneg %p133
    // Predicated region
    $region9: #{stacking_subsampling.1} parent=5 // pred_check
      _
    $region10: #{stacking_subsampling.1} parent=5 // pred_check_branch
      %136 = sbr.rel (%p133) target = $region12
    $region11: #{stacking_subsampling.1} parent=5 // pred_region
      %s137 = ssub.s32 %s9, 1
      // Predicated region
      $region13: #{stacking_subsampling.1} parent=11 // pred_check
        %p138 = pneg %p74
      $region14: #{stacking_subsampling.1} parent=11 // pred_check_branch
        %140 = sbr.rel (%p138) target = $region16
      $region15: #{stacking_subsampling.1} parent=11 // pred_region
        _
      $region16: #{stacking_subsampling.1} parent=11 // pred_fallthru
        _
      // Predicated region
      $region17: #{stacking_subsampling.1} parent=11 // pred_check
        %p141 = pneg %p95
      $region18: #{stacking_subsampling.1} parent=11 // pred_check_branch
        %143 = sbr.rel (%p141) target = $region20
      $region19: #{stacking_subsampling.1} parent=11 // pred_region
        _
      $region20: #{stacking_subsampling.1} parent=11 // pred_fallthru
        _
    $region12: #{stacking_subsampling.1} parent=5 // pred_fallthru
      _
    %p144 = scmp.lt.s32.totalorder %s9, 2
    // Predicated region
    $region21: #{stacking_subsampling.1} parent=5 // pred_check
      %p145 = pneg %p144
    $region22: #{stacking_subsampling.1} parent=5 // pred_check_branch
      %147 = sbr.rel (%p145) target = $region24
    $region23: #{stacking_subsampling.1} parent=5 // pred_region
      // Predicated region
      $region25: #{stacking_subsampling.1} parent=23 // pred_check
        %p148 = pneg %p47
      $region26: #{stacking_subsampling.1} parent=23 // pred_check_branch
        %150 = sbr.rel (%p148) target = $region28
      $region27: #{stacking_subsampling.1} parent=23 // pred_region
        %p151 = scmp.lt.s32.totalorder %s17, 0
        %s152 = scalar_select %p151, %s17, 0
        %s153 = smul.u32 8, %s152
        %s154 = ssub.s32 7, %s153
        %s155 = smul.u32 128, %s154
        %p156 = scmp.lt.s32.totalorder %s16, 1
        %s157 = scalar_select %p156, %s16, 1
        %p158 = scmp.lt.s32.totalorder %s153, 6
        %s159 = scalar_select %p158, %s153, 6
        %s160 = smul.addr %s157, 7
        %s161 = sadd.s32 %s159, %s160
        %s162 = smul.addr %s161, 8
        %s163 = scalar_lea.vmem %s0, %s162
        %p164 = scmp.lt.s32.totalorder %s17, 0
        %s165 = scalar_select %p164, %s17, 0
        %s166 = smul.u32 8, %s165
        %s167 = ssub.s32 7, %s166
        %s168 = smul.u32 128, %s167
      $region28: #{stacking_subsampling.1} parent=23 // pred_fallthru
        _
    $region24: #{stacking_subsampling.1} parent=5 // pred_fallthru
      _
    %p169 = scmp.le.s32.totalorder 1, %s9
    %p170 = scmp.lt.s32.totalorder %s9, 3
    %p171 = pnand %p169, %p170
    %p172 = pneg %p171
    // Predicated region
    $region29: #{stacking_subsampling.1} parent=5 // pred_check
      _
    $region30: #{stacking_subsampling.1} parent=5 // pred_check_branch
      %174 = sbr.rel (%p171) target = $region32
    $region31: #{stacking_subsampling.1} parent=5 // pred_region
      %s175 = ssub.s32 %s9, 1
      %p176 = scmp.lt.s32.totalorder %s19, 0
      %s177 = scalar_select %p176, %s19, 0
      %s178 = smul.u32 8, %s177
      %s179 = ssub.s32 7, %s178
      %s180 = smul.u32 128, %s179
      %p181 = scmp.lt.s32.totalorder %s18, 1
      %s182 = scalar_select %p181, %s18, 1
      %p183 = scmp.lt.s32.totalorder %s178, 6
      %s184 = scalar_select %p183, %s178, 6
      %s185 = smul.addr %s182, 7
      %s186 = sadd.s32 %s184, %s185
      %s187 = smul.addr %s186, 8
      %s188 = scalar_lea.vmem %s0, %s187
      %p189 = pneg %p53
      %p190 = pneg %p50
      %p191 = pneg %p74
      %p192 = pneg %p71
      %p193 = pneg %p95
      %p194 = pneg %p92
      %p195 = pneg %p123
      %p196 = pneg %p120
      %s197 = smul.u32 2, %s19
      %p198 = scmp.lt.s32.totalorder %s18, 1
      %s199 = scalar_select %p198, %s18, 1
      %p200 = scmp.lt.s32.totalorder %s197, 1
      %s201 = scalar_select %p200, %s197, 1
      %s202 = smul.addr %s199, 2
      %s203 = sadd.s32 %s201, %s202
      %s204 = smul.addr %s203, 8
      %s205 = scalar_lea.vmem %s3, %s204
      %p206 = scmp.lt.s32.totalorder %s19, 0
      %s207 = scalar_select %p206, %s19, 0
      %s208 = smul.u32 8, %s207
      %s209 = ssub.s32 7, %s208
      %s210 = smul.u32 128, %s209
      %p211 = scmp.lt.s32.totalorder %s18, 1
      %s212 = scalar_select %p211, %s18, 1
      %p213 = scmp.lt.s32.totalorder %s208, 6
      %s214 = scalar_select %p213, %s208, 6
      %s215 = smul.addr %s212, 7
      %s216 = sadd.s32 %s214, %s215
      %s217 = smul.addr %s216, 8
      %s218 = scalar_lea.vmem %s0, %s217
      %p219 = scmp.lt.s32.totalorder %s19, 0
      %s220 = scalar_select %p219, %s19, 0
      %s221 = smul.u32 8, %s220
      %s222 = ssub.s32 7, %s221
      %s223 = smul.u32 128, %s222
      %s224 = smul.u32 2, %s19
      %p225 = scmp.lt.s32.totalorder %s18, 1
      %s226 = scalar_select %p225, %s18, 1
      %p227 = scmp.lt.s32.totalorder %s224, 1
      %s228 = scalar_select %p227, %s224, 1
      %s229 = smul.addr %s226, 2
      %s230 = sadd.s32 %s228, %s229
      %s231 = smul.addr %s230, 8
      %s232 = scalar_lea.vmem %s3, %s231
      %s233 = smul.u32 2, %s19
      %s234 = smul.u32 %s19, 64
      %v235 = vlaneseq
      %v236 = vshrl.u32 %v235, 7
      %v237 = vadd.s32 %v236, 8
      %v238 = vadd.s32 %v236, 16
      %v239 = vadd.s32 %v236, 24
      %v240 = vadd.s32 %v236, 32
      %v241 = vadd.s32 %v236, 40
      %v242 = vadd.s32 %v236, 48
      %v243 = vadd.s32 %v236, 56
      %v244 = vstv %s234
      %v245 = vadd.s32 %v244, %v236
      %v246 = vadd.s32 %v244, %v237
      %v247 = vadd.s32 %v244, %v238
      %v248 = vadd.s32 %v244, %v239
      %v249 = vadd.s32 %v244, %v240
      %v250 = vadd.s32 %v244, %v241
      %v251 = vadd.s32 %v244, %v242
      %v252 = vadd.s32 %v244, %v243
      %vm253 = vcmp.lt.s32.totalorder %v245, 50
      %vm254 = vcmp.lt.s32.totalorder %v246, 50
      %vm255 = vcmp.lt.s32.totalorder %v247, 50
      %vm256 = vcmp.lt.s32.totalorder %v248, 50
      %vm257 = vcmp.lt.s32.totalorder %v249, 50
      %vm258 = vcmp.lt.s32.totalorder %v250, 50
      %vm259 = vcmp.lt.s32.totalorder %v251, 50
      %vm260 = vcmp.lt.s32.totalorder %v252, 50
      %v261 = vld [vmem:[%s218] sm:$0xff]
      %v262 = vld [vmem:[%s218 + $0x8] sm:$0xff]
      %v263 = vld [vmem:[%s218 + $0x10] sm:$0xff]
      %v264 = vld [vmem:[%s218 + $0x18] sm:$0xff]
      %v265 = vld [vmem:[%s218 + $0x20] sm:$0xff]
      %v266 = vld [vmem:[%s218 + $0x28] sm:$0xff]
      %v267 = vld [vmem:[%s218 + $0x30] sm:$0xff]
      %v268 = vld [vmem:[%s218 + $0x38] sm:$0xff]
      %v269 = vsel %vm253, %v261, 0.0
      %v270 = vsel %vm254, %v262, 0.0
      %v271 = vsel %vm255, %v263, 0.0
      %v272 = vsel %vm256, %v264, 0.0
      %v273 = vsel %vm257, %v265, 0.0
      %v274 = vsel %vm258, %v266, 0.0
      %v275 = vsel %vm259, %v267, 0.0
      %v276 = vsel %vm260, %v268, 0.0
      %vm277 = vcmask 261120
      %278 = vst.msk [vmem:[#allocation2] sm:$0xff] %vm277, %v269
      %279 = vst.msk [vmem:[#allocation2 + $0x8] sm:$0xff] %vm277, %v270
      %280 = vst.msk [vmem:[#allocation2 + $0x10] sm:$0xff] %vm277, %v271
      %281 = vst.msk [vmem:[#allocation2 + $0x18] sm:$0xff] %vm277, %v272
      %282 = vst.msk [vmem:[#allocation2 + $0x20] sm:$0xff] %vm277, %v273
      %283 = vst.msk [vmem:[#allocation2 + $0x28] sm:$0xff] %vm277, %v274
      %284 = vst.msk [vmem:[#allocation2 + $0x30] sm:$0xff] %vm277, %v275
      %285 = vst.msk [vmem:[#allocation2 + $0x38] sm:$0xff] %vm277, %v276
      %v286 = vld [vmem:[#allocation2] ss:$4 sm:$0xff]
      %s287 = scalar_lea.vmem [#allocation2], 32
      %v288 = vld [vmem:[%s287] ss:$4 sm:$0xff]
      %v289 = vld [vmem:[%s1] sm:$0xff]
      %v290 = vld [vmem:[%s1 + $0x8] sm:$0xff]
      %v291 = vld [vmem:[%s1 + $0x10] sm:$0xff]
      %v292 = vld [vmem:[%s1 + $0x18] sm:$0xff]
      %s293 = scalar_lea.vmem [#allocation2], 1
      %v294 = vld [vmem:[%s293] ss:$4 sm:$0xff]
      %s295 = scalar_lea.vmem [#allocation2], 33
      %v296 = vld [vmem:[%s295] ss:$4 sm:$0xff]
      %v297 = vld [vmem:[%s1 + $0x20] sm:$0xff]
      %v298 = vld [vmem:[%s1 + $0x28] sm:$0xff]
      %v299 = vld [vmem:[%s1 + $0x30] sm:$0xff]
      %v300 = vld [vmem:[%s1 + $0x38] sm:$0xff]
      %v302 = vsel %vm277, %v294, 0
      %v305 = vsel %vm277, %v296, 0
      %307 = vmatprep.subr.mxu0 0.0
      %308 = vmatpush1.msra.mxu0 %v297
      %309 = vmatprep.subr.mxu0 0.0
      %310 = vmatpush1.msra.mxu0 %v298
      %311 = vmatprep.subr.mxu0 0.0
      %312 = vmatpush1.msra.mxu0 %v299
      %313 = vmatprep.subr.mxu0 0.0
      %314 = vmatpush1.msra.mxu0 %v300
      %315 = vmatprep.subr.mxu0 0.0
      %316 = vmatpush1.msra.mxu0 0.0
      %317 = vmatprep.subr.mxu0 0.0
      %318 = vmatpush1.msra.mxu0 0.0
      %319 = vmatprep.subr.mxu0 0.0
      %320 = vmatpush1.msra.mxu0 0.0
      %321 = vmatprep.subr.mxu0 0.0
      %322 = vmatpush1.msra.mxu0 0.0
      %323 = vmatprep.subr.mxu0 0.0
      %324 = vmatpush1.msra.mxu0 0.0
      %325 = vmatprep.subr.mxu0 0.0
      %326 = vmatpush1.msra.mxu0 0.0
      %327 = vmatprep.subr.mxu0 0.0
      %328 = vmatpush1.msra.mxu0 0.0
      %329 = vmatprep.subr.mxu0 0.0
      %330 = vmatpush1.msra.mxu0 0.0
      %331 = vmatprep.subr.mxu0 0.0
      %332 = vmatpush1.msra.mxu0 0.0
      %333 = vmatprep.subr.mxu0 0.0
      %334 = vmatpush1.msra.mxu0 0.0
      %335 = vmatprep.subr.mxu0 0.0
      %336 = vmatpush1.msra.mxu0 0.0
      %337 = vmatprep.subr.mxu0 0.0
      %338 = vmatpush1.msra.mxu0 0.0
      %339 = vmatprep.subr.mxu0 0.0
      %340 = vmatpush1.msra.mxu0 0.0
      %341 = vmatprep.subr.mxu0 0.0
      %342 = vmatpush1.msra.mxu0 0.0
      %343 = vmatprep.subr.mxu0 0.0
      %344 = vmatpush1.msra.mxu0 0.0
      %345 = vmatprep.subr.mxu0 0.0
      %346 = vmatpush1.msra.mxu0 0.0
      %347 = vmatprep.subr.mxu0 0.0
      %348 = vmatpush1.msra.mxu0 0.0
      %349 = vmatprep.subr.mxu0 0.0
      %350 = vmatpush1.msra.mxu0 0.0
      %351 = vmatprep.subr.mxu0 0.0
      %352 = vmatpush1.msra.mxu0 0.0
      %353 = vmatprep.subr.mxu0 0.0
      %354 = vmatpush1.msra.mxu0 0.0
      %355 = vmatprep.subr.mxu0 0.0
      %356 = vmatpush1.msra.mxu0 0.0
      %357 = vmatprep.subr.mxu0 0.0
      %358 = vmatpush1.msra.mxu0 0.0
      %359 = vmatprep.subr.mxu0 0.0
      %360 = vmatpush1.msra.mxu0 0.0
      %361 = vmatprep.subr.mxu0 0.0
      %362 = vmatpush1.msra.mxu0 0.0
      %363 = vmatprep.subr.mxu0 0.0
      %364 = vmatpush1.msra.mxu0 0.0
      %365 = vmatprep.subr.mxu0 0.0
      %366 = vmatpush1.msra.mxu0 0.0
      %367 = vmatprep.subr.mxu0 0.0
      %368 = vmatpush1.msra.mxu0 0.0
      %369 = vmatprep.subr.mxu0 0.0
      %370 = vmatpush1.msra.mxu0 0.0
      %371 = vmatprep.mubr.f32.mxu0 0.0
      %372 = vmatmul.mubr.f32.gmra.mrb[0].mxu0 %v302
      %v373 = vpop.f32.mrb[0].mxu0
      %v374 = vadd.f32 0.0, %v373
      %v375 = vpop.f32.mrb[0].mxu0
      %376 = vmatprep.mubr.f32.mxu0 0.0
      %377 = vmatmul.mubr.f32.gmra.mrb[0].mxu0 %v305
      %v378 = vpop.f32.mrb[0].mxu0
      %v379 = vadd.f32 0.0, %v378
      %v380 = vpop.f32.mrb[0].mxu0
      %381 = vdwg.mxu0
      %v383 = vsel %vm277, %v286, 0
      %v386 = vsel %vm277, %v288, 0
      %388 = vmatprep.subr.mxu0 0.0
      %389 = vmatpush1.msra.mxu0 %v289
      %390 = vmatprep.subr.mxu0 0.0
      %391 = vmatpush1.msra.mxu0 %v290
      %392 = vmatprep.subr.mxu0 0.0
      %393 = vmatpush1.msra.mxu0 %v291
      %394 = vmatprep.subr.mxu0 0.0
      %395 = vmatpush1.msra.mxu0 %v292
      %396 = vmatprep.subr.mxu0 0.0
      %397 = vmatpush1.msra.mxu0 0.0
      %398 = vmatprep.subr.mxu0 0.0
      %399 = vmatpush1.msra.mxu0 0.0
      %400 = vmatprep.subr.mxu0 0.0
      %401 = vmatpush1.msra.mxu0 0.0
      %402 = vmatprep.subr.mxu0 0.0
      %403 = vmatpush1.msra.mxu0 0.0
      %404 = vmatprep.subr.mxu0 0.0
      %405 = vmatpush1.msra.mxu0 0.0
      %406 = vmatprep.subr.mxu0 0.0
      %407 = vmatpush1.msra.mxu0 0.0
      %408 = vmatprep.subr.mxu0 0.0
      %409 = vmatpush1.msra.mxu0 0.0
      %410 = vmatprep.subr.mxu0 0.0
      %411 = vmatpush1.msra.mxu0 0.0
      %412 = vmatprep.subr.mxu0 0.0
      %413 = vmatpush1.msra.mxu0 0.0
      %414 = vmatprep.subr.mxu0 0.0
      %415 = vmatpush1.msra.mxu0 0.0
      %416 = vmatprep.subr.mxu0 0.0
      %417 = vmatpush1.msra.mxu0 0.0
      %418 = vmatprep.subr.mxu0 0.0
      %419 = vmatpush1.msra.mxu0 0.0
      %420 = vmatprep.subr.mxu0 0.0
      %421 = vmatpush1.msra.mxu0 0.0
      %422 = vmatprep.subr.mxu0 0.0
      %423 = vmatpush1.msra.mxu0 0.0
      %424 = vmatprep.subr.mxu0 0.0
      %425 = vmatpush1.msra.mxu0 0.0
      %426 = vmatprep.subr.mxu0 0.0
      %427 = vmatpush1.msra.mxu0 0.0
      %428 = vmatprep.subr.mxu0 0.0
      %429 = vmatpush1.msra.mxu0 0.0
      %430 = vmatprep.subr.mxu0 0.0
      %431 = vmatpush1.msra.mxu0 0.0
      %432 = vmatprep.subr.mxu0 0.0
      %433 = vmatpush1.msra.mxu0 0.0
      %434 = vmatprep.subr.mxu0 0.0
      %435 = vmatpush1.msra.mxu0 0.0
      %436 = vmatprep.subr.mxu0 0.0
      %437 = vmatpush1.msra.mxu0 0.0
      %438 = vmatprep.subr.mxu0 0.0
      %439 = vmatpush1.msra.mxu0 0.0
      %440 = vmatprep.subr.mxu0 0.0
      %441 = vmatpush1.msra.mxu0 0.0
      %442 = vmatprep.subr.mxu0 0.0
      %443 = vmatpush1.msra.mxu0 0.0
      %444 = vmatprep.subr.mxu0 0.0
      %445 = vmatpush1.msra.mxu0 0.0
      %446 = vmatprep.subr.mxu0 0.0
      %447 = vmatpush1.msra.mxu0 0.0
      %448 = vmatprep.subr.mxu0 0.0
      %449 = vmatpush1.msra.mxu0 0.0
      %450 = vmatprep.subr.mxu0 0.0
      %451 = vmatpush1.msra.mxu0 0.0
      %452 = vmatprep.mubr.f32.mxu0 0.0
      %453 = vmatmul.mubr.f32.gmra.mrb[0].mxu0 %v383
      %v454 = vpop.f32.mrb[0].mxu0
      %v455 = vadd.f32 %v374, %v454
      %v456 = vpop.f32.mrb[0].mxu0
      %457 = vmatprep.mubr.f32.mxu0 0.0
      %458 = vmatmul.mubr.f32.gmra.mrb[0].mxu0 %v386
      %v459 = vpop.f32.mrb[0].mxu0
      %v460 = vadd.f32 %v379, %v459
      %v461 = vpop.f32.mrb[0].mxu0
      %462 = vdwg.mxu0
      %s463 = scalar_lea.vmem [#allocation2], 2
      %v464 = vld [vmem:[%s463] ss:$4 sm:$0xff]
      %s465 = scalar_lea.vmem [#allocation2], 34
      %v466 = vld [vmem:[%s465] ss:$4 sm:$0xff]
      %v467 = vld [vmem:[%s1 + $0x40] sm:$0xff]
      %v468 = vld [vmem:[%s1 + $0x48] sm:$0xff]
      %v469 = vld [vmem:[%s1 + $0x50] sm:$0xff]
      %v470 = vld [vmem:[%s1 + $0x58] sm:$0xff]
      %v472 = vsel %vm277, %v464, 0
      %v475 = vsel %vm277, %v466, 0
      %477 = vmatprep.subr.mxu0 0.0
      %478 = vmatpush1.msra.mxu0 %v467
      %479 = vmatprep.subr.mxu0 0.0
      %480 = vmatpush1.msra.mxu0 %v468
      %481 = vmatprep.subr.mxu0 0.0
      %482 = vmatpush1.msra.mxu0 %v469
      %483 = vmatprep.subr.mxu0 0.0
      %484 = vmatpush1.msra.mxu0 %v470
      %485 = vmatprep.subr.mxu0 0.0
      %486 = vmatpush1.msra.mxu0 0.0
      %487 = vmatprep.subr.mxu0 0.0
      %488 = vmatpush1.msra.mxu0 0.0
      %489 = vmatprep.subr.mxu0 0.0
      %490 = vmatpush1.msra.mxu0 0.0
      %491 = vmatprep.subr.mxu0 0.0
      %492 = vmatpush1.msra.mxu0 0.0
      %493 = vmatprep.subr.mxu0 0.0
      %494 = vmatpush1.msra.mxu0 0.0
      %495 = vmatprep.subr.mxu0 0.0
      %496 = vmatpush1.msra.mxu0 0.0
      %497 = vmatprep.subr.mxu0 0.0
      %498 = vmatpush1.msra.mxu0 0.0
      %499 = vmatprep.subr.mxu0 0.0
      %500 = vmatpush1.msra.mxu0 0.0
      %501 = vmatprep.subr.mxu0 0.0
      %502 = vmatpush1.msra.mxu0 0.0
      %503 = vmatprep.subr.mxu0 0.0
      %504 = vmatpush1.msra.mxu0 0.0
      %505 = vmatprep.subr.mxu0 0.0
      %506 = vmatpush1.msra.mxu0 0.0
      %507 = vmatprep.subr.mxu0 0.0
      %508 = vmatpush1.msra.mxu0 0.0
      %509 = vmatprep.subr.mxu0 0.0
      %510 = vmatpush1.msra.mxu0 0.0
      %511 = vmatprep.subr.mxu0 0.0
      %512 = vmatpush1.msra.mxu0 0.0
      %513 = vmatprep.subr.mxu0 0.0
      %514 = vmatpush1.msra.mxu0 0.0
      %515 = vmatprep.subr.mxu0 0.0
      %516 = vmatpush1.msra.mxu0 0.0
      %517 = vmatprep.subr.mxu0 0.0
      %518 = vmatpush1.msra.mxu0 0.0
      %519 = vmatprep.subr.mxu0 0.0
      %520 = vmatpush1.msra.mxu0 0.0
      %521 = vmatprep.subr.mxu0 0.0
      %522 = vmatpush1.msra.mxu0 0.0
      %523 = vmatprep.subr.mxu0 0.0
      %524 = vmatpush1.msra.mxu0 0.0
      %525 = vmatprep.subr.mxu0 0.0
      %526 = vmatpush1.msra.mxu0 0.0
      %527 = vmatprep.subr.mxu0 0.0
      %528 = vmatpush1.msra.mxu0 0.0
      %529 = vmatprep.subr.mxu0 0.0
      %530 = vmatpush1.msra.mxu0 0.0
      %531 = vmatprep.subr.mxu0 0.0
      %532 = vmatpush1.msra.mxu0 0.0
      %533 = vmatprep.subr.mxu0 0.0
      %534 = vmatpush1.msra.mxu0 0.0
      %535 = vmatprep.subr.mxu0 0.0
      %536 = vmatpush1.msra.mxu0 0.0
      %537 = vmatprep.subr.mxu0 0.0
      %538 = vmatpush1.msra.mxu0 0.0
      %539 = vmatprep.subr.mxu0 0.0
      %540 = vmatpush1.msra.mxu0 0.0
      %541 = vmatprep.mubr.f32.mxu0 0.0
      %542 = vmatmul.mubr.f32.gmra.mrb[0].mxu0 %v472
      %v543 = vpop.f32.mrb[0].mxu0
      %v544 = vadd.f32 0.0, %v543
      %v545 = vpop.f32.mrb[0].mxu0
      %546 = vmatprep.mubr.f32.mxu0 0.0
      %547 = vmatmul.mubr.f32.gmra.mrb[0].mxu0 %v475
      %v548 = vpop.f32.mrb[0].mxu0
      %v549 = vadd.f32 0.0, %v548
      %v550 = vpop.f32.mrb[0].mxu0
      %551 = vdwg.mxu0
      %v552 = vadd.f32 %v455, %v544
      %v553 = vadd.f32 %v460, %v549
      %s554 = scalar_lea.vmem [#allocation2], 3
      %v555 = vld [vmem:[%s554] ss:$4 sm:$0xff]
      %s556 = scalar_lea.vmem [#allocation2], 35
      %v557 = vld [vmem:[%s556] ss:$4 sm:$0xff]
      %v558 = vld [vmem:[%s1 + $0x60] sm:$0xff]
      %v559 = vld [vmem:[%s1 + $0x68] sm:$0xff]
      %v560 = vld [vmem:[%s1 + $0x70] sm:$0xff]
      %v561 = vld [vmem:[%s1 + $0x78] sm:$0xff]
      %v563 = vsel %vm277, %v555, 0
      %v566 = vsel %vm277, %v557, 0
      %568 = vmatprep.subr.mxu0 0.0
      %569 = vmatpush1.msra.mxu0 %v558
      %570 = vmatprep.subr.mxu0 0.0
      %571 = vmatpush1.msra.mxu0 %v559
      %572 = vmatprep.subr.mxu0 0.0
      %573 = vmatpush1.msra.mxu0 %v560
      %574 = vmatprep.subr.mxu0 0.0
      %575 = vmatpush1.msra.mxu0 %v561
      %576 = vmatprep.subr.mxu0 0.0
      %577 = vmatpush1.msra.mxu0 0.0
      %578 = vmatprep.subr.mxu0 0.0
      %579 = vmatpush1.msra.mxu0 0.0
      %580 = vmatprep.subr.mxu0 0.0
      %581 = vmatpush1.msra.mxu0 0.0
      %582 = vmatprep.subr.mxu0 0.0
      %583 = vmatpush1.msra.mxu0 0.0
      %584 = vmatprep.subr.mxu0 0.0
      %585 = vmatpush1.msra.mxu0 0.0
      %586 = vmatprep.subr.mxu0 0.0
      %587 = vmatpush1.msra.mxu0 0.0
      %588 = vmatprep.subr.mxu0 0.0
      %589 = vmatpush1.msra.mxu0 0.0
      %590 = vmatprep.subr.mxu0 0.0
      %591 = vmatpush1.msra.mxu0 0.0
      %592 = vmatprep.subr.mxu0 0.0
      %593 = vmatpush1.msra.mxu0 0.0
      %594 = vmatprep.subr.mxu0 0.0
      %595 = vmatpush1.msra.mxu0 0.0
      %596 = vmatprep.subr.mxu0 0.0
      %597 = vmatpush1.msra.mxu0 0.0
      %598 = vmatprep.subr.mxu0 0.0
      %599 = vmatpush1.msra.mxu0 0.0
      %600 = vmatprep.subr.mxu0 0.0
      %601 = vmatpush1.msra.mxu0 0.0
      %602 = vmatprep.subr.mxu0 0.0
      %603 = vmatpush1.msra.mxu0 0.0
      %604 = vmatprep.subr.mxu0 0.0
      %605 = vmatpush1.msra.mxu0 0.0
      %606 = vmatprep.subr.mxu0 0.0
      %607 = vmatpush1.msra.mxu0 0.0
      %608 = vmatprep.subr.mxu0 0.0
      %609 = vmatpush1.msra.mxu0 0.0
      %610 = vmatprep.subr.mxu0 0.0
      %611 = vmatpush1.msra.mxu0 0.0
      %612 = vmatprep.subr.mxu0 0.0
      %613 = vmatpush1.msra.mxu0 0.0
      %614 = vmatprep.subr.mxu0 0.0
      %615 = vmatpush1.msra.mxu0 0.0
      %616 = vmatprep.subr.mxu0 0.0
      %617 = vmatpush1.msra.mxu0 0.0
      %618 = vmatprep.subr.mxu0 0.0
      %619 = vmatpush1.msra.mxu0 0.0
      %620 = vmatprep.subr.mxu0 0.0
      %621 = vmatpush1.msra.mxu0 0.0
      %622 = vmatprep.subr.mxu0 0.0
      %623 = vmatpush1.msra.mxu0 0.0
      %624 = vmatprep.subr.mxu0 0.0
      %625 = vmatpush1.msra.mxu0 0.0
      %626 = vmatprep.subr.mxu0 0.0
      %627 = vmatpush1.msra.mxu0 0.0
      %628 = vmatprep.subr.mxu0 0.0
      %629 = vmatpush1.msra.mxu0 0.0
      %630 = vmatprep.subr.mxu0 0.0
      %631 = vmatpush1.msra.mxu0 0.0
      %632 = vmatprep.mubr.f32.mxu0 0.0
      %633 = vmatmul.mubr.f32.gmra.mrb[0].mxu0 %v563
      %v634 = vpop.f32.mrb[0].mxu0
      %v635 = vadd.f32 0.0, %v634
      %v636 = vpop.f32.mrb[0].mxu0
      %637 = vmatprep.mubr.f32.mxu0 0.0
      %638 = vmatmul.mubr.f32.gmra.mrb[0].mxu0 %v566
      %v639 = vpop.f32.mrb[0].mxu0
      %v640 = vadd.f32 0.0, %v639
      %v641 = vpop.f32.mrb[0].mxu0
      %642 = vdwg.mxu0
      %v643 = vadd.f32 %v552, %v635
      %v644 = vadd.f32 %v553, %v640
      %v645 = vld [vmem:[%s2] sm:$0x1]
      %v647 = vlaneseq
      %v648 = vshrl.u32 %v647, 7
      %v649 = vsub.s32 0, %v648
      %v650 = vrot.slane %v645, %v649
      %v652 = vadd.f32 %v643, %v650
      %v653 = vadd.f32 %v644, %v650
      %654 = vst [vmem:[%s232] sm:$0xff] %v652
      %655 = vst [vmem:[%s232 + $0x8] sm:$0xff] %v653
      %s656 = smul.u32 2, %s19
      %p657 = scmp.lt.s32.totalorder %s18, 1
      %s658 = scalar_select %p657, %s18, 1
      %p659 = scmp.lt.s32.totalorder %s656, 1
      %s660 = scalar_select %p659, %s656, 1
      %s661 = smul.addr %s658, 2
      %s662 = sadd.s32 %s660, %s661
      %s663 = smul.addr %s662, 8
      %s664 = scalar_lea.vmem %s3, %s663
      // Predicated region
      $region33: #{stacking_subsampling.1} parent=31 // pred_check
        %p665 = pneg %p120
      $region34: #{stacking_subsampling.1} parent=31 // pred_check_branch
        %667 = sbr.rel (%p665) target = $region36
      $region35: #{stacking_subsampling.1} parent=31 // pred_region
        %s668 = smul.u32 2, %s19
      $region36: #{stacking_subsampling.1} parent=31 // pred_fallthru
        _
    $region32: #{stacking_subsampling.1} parent=5 // pred_fallthru
      _
    %p669 = scmp.le.s32.totalorder 2, %s9
    // Predicated region
    $region37: #{stacking_subsampling.1} parent=5 // pred_check
      %p670 = pneg %p669
    $region38: #{stacking_subsampling.1} parent=5 // pred_check_branch
      %672 = sbr.rel (%p670) target = $region40
    $region39: #{stacking_subsampling.1} parent=5 // pred_region
      %s673 = ssub.s32 %s9, 2
      // Predicated region
      $region41: #{stacking_subsampling.1} parent=39 // pred_check
        %p674 = pneg %p126
      $region42: #{stacking_subsampling.1} parent=39 // pred_check_branch
        %676 = sbr.rel (%p674) target = $region44
      $region43: #{stacking_subsampling.1} parent=39 // pred_region
        %s677 = smul.u32 2, %s21
        %p678 = scmp.lt.s32.totalorder %s20, 1
        %s679 = scalar_select %p678, %s20, 1
        %p680 = scmp.lt.s32.totalorder %s677, 1
        %s681 = scalar_select %p680, %s677, 1
        %s682 = smul.addr %s679, 2
        %s683 = sadd.s32 %s681, %s682
        %s684 = smul.addr %s683, 8
        %s685 = scalar_lea.vmem %s3, %s684
      $region44: #{stacking_subsampling.1} parent=39 // pred_fallthru
        _
    $region40: #{stacking_subsampling.1} parent=5 // pred_fallthru
      _
  $region6: #{stacking_subsampling.1} parent=0 // loop_footer
    %s13 = sadd.s32 1, %s9
  $region7: #{stacking_subsampling.1} parent=0 // loop_footer_branch
    %8 = sbr.rel target = $region3
  $region8: #{stacking_subsampling.1} parent=0 // loop_exit
    _

</llo_original>
